<compile_context>
chip_gen: v5e
topology: v5e:2x2
jax: 0.10.0
libtpu: 0.0.40
codegen_flags: <defaults>
</compile_context>

<pallas_src>
import functools

import jax
import jax.numpy as jnp
from jax.experimental import pallas as pl
from jax.experimental.pallas import tpu as pltpu


_LANES = 128


def _round_up(n, m):
    return -(-int(n) // int(m)) * int(m)


def _default_vmem_budget_bytes():
    """Generation-aware VMEM tiling budget (headroom below physical VMEM)."""
    cap = 128 << 20
    try:
        info = pltpu.get_tpu_info()
        cap = int(getattr(info, "vmem_capacity_bytes", cap))
    except Exception:
        pass
    if cap <= (64 << 20):          # v7x-class: 64 MiB per TensorCore
        return 48 << 20
    return 96 << 20                # v5e / v6e: 128 MiB


def _pooled_sum_f32(x_ref, valid=None):
    """Sum a (bt, C, L) ref over its last axis in f32 -> (bt, C).

    Two-stage: 128-lane chunks added on the VPU into one f32 accumulator, then
    a single cross-lane reduce.  If `valid` (traced scalar) is given, lane
    positions >= valid are ignored (partial edge tiles in the two-pass path).
    """
    L = x_ref.shape[-1]
    n_full, rem = divmod(L, _LANES)

    def chunk(lo, size):
        c = x_ref[:, :, lo:lo + size].astype(jnp.float32)
        if valid is None:
            return c
        lane = jax.lax.broadcasted_iota(jnp.int32, c.shape, c.ndim - 1)
        return jnp.where(lo + lane < valid, c, 0.0)

    if n_full == 0:
        return jnp.sum(chunk(0, L), axis=-1)

    # TODO(synk): for very large HW (hundreds of chunks) a fori_loop with a
    # 128-aligned dynamic lane offset would bound code size further; static
    # unrolling is kept here since block sizes are already VMEM-bounded.
    acc = chunk(0, _LANES)
    for k in range(1, n_full):
        acc = acc + chunk(k * _LANES, _LANES)
    s = jnp.sum(acc, axis=-1)
    if rem:
        s = s + jnp.sum(chunk(n_full * _LANES, rem), axis=-1)
    return s


def _excite(pooled_f32, w1t, w2t):
    """sigmoid(relu(pooled @ w1t) @ w2t) in f32; native-dtype MXU operands."""
    h = jnp.dot(pooled_f32.astype(w1t.dtype), w1t,
                preferred_element_type=jnp.float32)
    h = jnp.maximum(h, 0.0)
    y = jnp.dot(h.astype(w2t.dtype), w2t, preferred_element_type=jnp.float32)
    return jax.nn.sigmoid(y)


# ---------------------------------------------------------------------------
# Single-pass kernel: one (b_tile, C, HW) block -> pool + excite + rescale.
# ---------------------------------------------------------------------------
def _se_kernel(x_ref, w1t_ref, w2t_ref, o_ref, *, inv_hw):
    pooled = _pooled_sum_f32(x_ref) * inv_hw                    # (bt, C) f32
    gate = _excite(pooled, w1t_ref[...], w2t_ref[...])          # (bt, C) f32
    o_ref[...] = x_ref[...] * gate.astype(o_ref.dtype)[:, :, None]


# ---------------------------------------------------------------------------
# Two-pass fallback kernels (HW-tiled; used when a full-HW block can't fit).
# ---------------------------------------------------------------------------
def _pool_excite_kernel(x_ref, w1t_ref, w2t_ref, gate_ref, acc_ref, *,
                        inv_hw, hw, hw_tile):
    b = pl.program_id(0)
    j = pl.program_id(1)

    @pl.when(j == 0)
    def _():
        acc_ref[...] = jnp.zeros_like(acc_ref)

    valid = (hw - j * hw_tile) if (hw % hw_tile) else None
    acc_ref[...] += _pooled_sum_f32(x_ref, valid=valid)         # (1, C) f32

    @pl.when(j == pl.num_programs(1) - 1)
    def _():
        pooled = acc_ref[...] * inv_hw
        gate_ref[pl.ds(b, 1), :] = _excite(pooled, w1t_ref[...], w2t_ref[...])


def _scale_kernel(gate_ref, x_ref, o_ref):
    b = pl.program_id(0)
    g = gate_ref[pl.ds(b, 1), :].astype(o_ref.dtype)            # (1, C)
    o_ref[...] = x_ref[...] * g[:, :, None]


# ---------------------------------------------------------------------------
# Wrappers
# ---------------------------------------------------------------------------
def _choose_b_tile(B, per_batch_block, per_batch_total, avail):
    fit = max(1, int(avail // max(1, per_batch_total)))
    size_cap = max(1, (16 << 20) // max(1, per_batch_block))    # ~<=16 MiB blocks
    bt = min(B, fit, size_cap)
    if B >= 4:
        bt = min(bt, -(-B // 4))       # keep >= ~4 grid steps (pipeline depth)
    elif B >= 2:
        bt = min(bt, -(-B // 2))       # keep both v7x TensorCores busy
    return max(1, bt)


def _se_single_pass(x_flat, w1t, w2t, *, B, C, HW, per_batch_block,
                    per_batch_total, fixed, budget, gen_cap):
    b_tile = _choose_b_tile(B, per_batch_block, per_batch_total, budget - fixed)
    grid = (pl.cdiv(B, b_tile),)
    vmem_limit = int(min(max(fixed + b_tile * per_batch_total + (2 << 20),
                             16 << 20), gen_cap))
    kernel = functools.partial(_se_kernel, inv_hw=1.0 / HW)
    return pl.pallas_call(
        kernel,
        out_shape=jax.ShapeDtypeStruct((B, C, HW), x_flat.dtype),
        grid_spec=pltpu.PrefetchScalarGridSpec(
            num_scalar_prefetch=0,
            grid=grid,
            in_specs=[
                pl.BlockSpec((b_tile, C, HW), lambda b: (b, 0, 0)),
                pl.BlockSpec(w1t.shape, lambda b: (0, 0)),
                pl.BlockSpec(w2t.shape, lambda b: (0, 0)),
            ],
            out_specs=pl.BlockSpec((b_tile, C, HW), lambda b: (b, 0, 0)),
        ),
        compiler_params=pltpu.CompilerParams(
            dimension_semantics=("parallel",),
            vmem_limit_bytes=vmem_limit),
    )(x_flat, w1t, w2t)


def _se_two_pass(x_flat, w1t, w2t, *, B, C, HW, itemsize, c_pad, w_vmem,
                 budget, gen_cap):
    # TODO(synk): add C tiling for the (rare) case where even a 128-lane HW
    # tile of all channels exceeds the VMEM budget.
    gate_vmem = 2 * _round_up(B, 8) * _round_up(C, _LANES) * 4
    slack = 512 << 10
    avail = budget - (w_vmem + gate_vmem + slack)
    bytes_per_lane = c_pad * (4 * itemsize + 4)   # dbl-buffered in+out + f32 temp
    cap_by_budget = (max(avail, 0) // bytes_per_lane) // _LANES * _LANES
    cap_by_size = (16 << 20) // max(1, c_pad * itemsize) // _LANES * _LANES
    hw_tile = max(_LANES, min(cap_by_budget, cap_by_size))
    if hw_tile >= HW:
        hw_tile = HW
    n_hw = pl.cdiv(HW, hw_tile)

    hw_tile_pad = _round_up(hw_tile, _LANES)
    vmem_need = (w_vmem + gate_vmem + 4 * c_pad * hw_tile_pad * itemsize
                 + c_pad * hw_tile_pad * 4 + c_pad * _LANES * 4 + (2 << 20))
    vmem_limit = int(min(max(vmem_need, 16 << 20), gen_cap))

    # Pass 1: pooled sum over HW tiles (VMEM scratch accumulator) -> (B, C) gate.
    pool_kernel = functools.partial(_pool_excite_kernel, inv_hw=1.0 / HW,
                                    hw=HW, hw_tile=hw_tile)
    gate = pl.pallas_call(
        pool_kernel,
        out_shape=jax.ShapeDtypeStruct((B, C), jnp.float32),
        grid_spec=pltpu.PrefetchScalarGridSpec(
            num_scalar_prefetch=0,
            grid=(B, n_hw),
            in_specs=[
                pl.BlockSpec((1, C, hw_tile), lambda b, j: (b, 0, j)),
                pl.BlockSpec(w1t.shape, lambda b, j: (0, 0)),
                pl.BlockSpec(w2t.shape, lambda b, j: (0, 0)),
            ],
            out_specs=pl.BlockSpec((B, C), lambda b, j: (0, 0)),
            scratch_shapes=[pltpu.VMEM((1, C), jnp.float32)],
        ),
        compiler_params=pltpu.CompilerParams(
            dimension_semantics=("arbitrary", "arbitrary"),
            vmem_limit_bytes=vmem_limit),
    )(x_flat, w1t, w2t)

    # Pass 2: stream HW tiles again and rescale by the per-channel gate.
    return pl.pallas_call(
        _scale_kernel,
        out_shape=jax.ShapeDtypeStruct((B, C, HW), x_flat.dtype),
        grid_spec=pltpu.PrefetchScalarGridSpec(
            num_scalar_prefetch=0,
            grid=(B, n_hw),
            in_specs=[
                pl.BlockSpec((B, C), lambda b, j: (0, 0)),
                pl.BlockSpec((1, C, hw_tile), lambda b, j: (b, 0, j)),
            ],
            out_specs=pl.BlockSpec((1, C, hw_tile), lambda b, j: (b, 0, j)),
        ),
        compiler_params=pltpu.CompilerParams(
            dimension_semantics=("parallel", "parallel"),
            vmem_limit_bytes=vmem_limit),
    )(gate, x_flat)


def se_attention(x, w1, w2, *, vmem_budget_bytes=None):
    """x: (B, C, H, W) NCHW;  w1: (C//r, C);  w2: (C, C//r)."""
    B, C, H, W = x.shape
    HW = H * W
    Cr = w1.shape[0]

    x_flat = x.reshape(B, C, HW)
    w1t = w1.T            # (C, Cr)
    w2t = w2.T            # (Cr, C)

    gen_cap = _default_vmem_budget_bytes()
    budget = gen_cap if vmem_budget_bytes is None else int(vmem_budget_bytes)

    itemsize = jnp.dtype(x.dtype).itemsize
    w_itemsize = jnp.dtype(w1.dtype).itemsize
    c_pad = _round_up(C, 8)
    hw_lanes = _round_up(HW, _LANES)

    # Per-grid-step VMEM accounting: double-buffered in + out blocks, one
    # block-sized f32 temporary, f32 pool accumulator; plus resident weights.
    per_batch_block = c_pad * hw_lanes * itemsize
    per_batch_total = c_pad * hw_lanes * (4 * itemsize + 4) + c_pad * _LANES * 4
    w_vmem = 2 * (_round_up(C, 8) * _round_up(Cr, _LANES)
                  + _round_up(Cr, 8) * _round_up(C, _LANES)) * w_itemsize
    fixed = w_vmem + (512 << 10)

    if fixed + per_batch_total <= budget:
        out_flat = _se_single_pass(
            x_flat, w1t, w2t, B=B, C=C, HW=HW,
            per_batch_block=per_batch_block, per_batch_total=per_batch_total,
            fixed=fixed, budget=budget, gen_cap=gen_cap)
    else:
        out_flat = _se_two_pass(
            x_flat, w1t, w2t, B=B, C=C, HW=HW, itemsize=itemsize, c_pad=c_pad,
            w_vmem=w_vmem, budget=budget, gen_cap=gen_cap)
    return out_flat.reshape(B, C, H, W)


def se_attention_ref(x, w1, w2):
    """Pure-JAX reference mirroring the PyTorch forward."""
    y = jnp.mean(x, axis=(2, 3))                 # (B, C)
    y = jnp.maximum(y @ w1.T, 0.0)               # (B, C//r)
    y = jax.nn.sigmoid(y @ w2.T)                 # (B, C)
    return x * y[:, :, None, None]


if __name__ == "__main__":
    key = jax.random.PRNGKey(0)

    def run_case(B, C, H, W, reduction, k, dtype=jnp.float32, tol=2e-5,
                 vmem_budget_bytes=None):
        Cr = max(1, C // reduction)
        kx, k1, k2 = jax.random.split(k, 3)
        x = jax.random.normal(kx, (B, C, H, W), dtype=jnp.float32).astype(dtype)
        w1 = (0.001 * jax.random.normal(k1, (Cr, C), dtype=jnp.float32)).astype(dtype)
        w2 = (0.001 * jax.random.normal(k2, (C, Cr), dtype=jnp.float32)).astype(dtype)
        out = jax.block_until_ready(
            se_attention(x, w1, w2, vmem_budget_bytes=vmem_budget_bytes))
        ref = se_attention_ref(x.astype(jnp.float32), w1.astype(jnp.float32),
                               w2.astype(jnp.float32))
        assert out.shape == x.shape
        err = float(jnp.max(jnp.abs(out.astype(jnp.float32) - ref)))
        assert err <= tol, (
            f"mismatch (B={B},C={C},H={H},W={W},dtype={dtype}): max err {err}")

    keys = jax.random.split(key, 6)
    # main case: C=64, r=16, 16x16 maps (HW=256 -> two 128-lane chunks)
    run_case(2, 64, 16, 16, 16, keys[0])
    # odd spatial: 7x7 maps (HW=49 < 128) -- full-HW block, no pad/slice round trips
    run_case(2, 32, 7, 7, 16, keys[1])
    # non-divisor batch: B=3 with b_tile=2 -> cdiv grid + clipped edge block
    run_case(3, 32, 8, 8, 8, keys[2])
    # larger spatial: 36x36 (HW=1296 -> 10 full chunks + remainder of 16 lanes)
    run_case(2, 64, 36, 36, 16, keys[3])
    # bf16 inputs/weights (rescale multiply stays in bf16; looser tolerance)
    run_case(2, 64, 16, 16, 16, keys[4], dtype=jnp.bfloat16, tol=3e-2)
    # forced two-pass fallback (tiny budget): HW tiled with a masked edge tile
    run_case(2, 32, 30, 30, 8, keys[5], vmem_budget_bytes=1 << 20)

    print("KERNEL_OK")
</pallas_src>

<mosaic_0001>
module attributes {stable_mosaic.version = 11 : i64} {
  func.func @_se_kernel(%arg0: i32, %arg1: memref<1x64x256xf32, #tpu.memory_space<vmem>>, %arg2: memref<64x4xf32, #tpu.memory_space<vmem>>, %arg3: memref<4x64xf32, #tpu.memory_space<vmem>>, %arg4: memref<1x64x256xf32, #tpu.memory_space<vmem>>) attributes {dimension_semantics = [#tpu.dimension_semantics<parallel>], iteration_bounds = array<i64: 2>, scalar_prefetch = 0 : i64, scratch_operands = 0 : i64, tpu.core_type = #tpu.core_type<tc>, window_params = [{transform_indices = @transform_0, window_bounds = array<i64: 1, 64, 256>}, {pipeline_mode = #tpu.pipeline_mode<synchronous>, transform_indices = @transform_1, window_bounds = array<i64: 64, 4>}, {pipeline_mode = #tpu.pipeline_mode<synchronous>, transform_indices = @transform_2, window_bounds = array<i64: 4, 64>}, {transform_indices = @transform_3, window_bounds = array<i64: 1, 64, 256>}]} {
    %c0 = arith.constant 0 : index
    %c0_0 = arith.constant 0 : index
    %c0_1 = arith.constant 0 : index
    %0 = vector.load %arg1[%c0, %c0_0, %c0_1] : memref<1x64x256xf32, #tpu.memory_space<vmem>>, vector<1x64x128xf32>
    %c0_2 = arith.constant 0 : index
    %c0_3 = arith.constant 0 : index
    %c128 = arith.constant 128 : index
    %1 = vector.load %arg1[%c0_2, %c0_3, %c128] : memref<1x64x256xf32, #tpu.memory_space<vmem>>, vector<1x64x128xf32>
    %2 = arith.addf %0, %1 : vector<1x64x128xf32>
    %cst = arith.constant dense<0.000000e+00> : vector<1x64xf32>
    %3 = vector.multi_reduction <add>, %2, %cst [2] : vector<1x64x128xf32> to vector<1x64xf32>
    %cst_4 = arith.constant 3.906250e-03 : f32
    %4 = vector.broadcast %cst_4 : f32 to vector<1x64xf32>
    %5 = arith.mulf %3, %4 : vector<1x64xf32>
    %c0_5 = arith.constant 0 : index
    %c0_6 = arith.constant 0 : index
    %6 = vector.load %arg2[%c0_5, %c0_6] : memref<64x4xf32, #tpu.memory_space<vmem>>, vector<64x4xf32>
    %c0_7 = arith.constant 0 : index
    %c0_8 = arith.constant 0 : index
    %7 = vector.load %arg3[%c0_7, %c0_8] : memref<4x64xf32, #tpu.memory_space<vmem>>, vector<4x64xf32>
    %cst_9 = arith.constant dense<0.000000e+00> : vector<1x4xf32>
    %8 = tpu.matmul %5, %6, %cst_9 {dimension_numbers = #tpu.dot_dimension_numbers<[1], [0], [0], [1], [0, 0, 1, 1], [], []>} : vector<1x64xf32>, vector<64x4xf32>, vector<1x4xf32> -> vector<1x4xf32>
    %cst_10 = arith.constant 0.000000e+00 : f32
    %9 = vector.broadcast %cst_10 : f32 to vector<1x4xf32>
    %10 = arith.maximumf %8, %9 : vector<1x4xf32>
    %cst_11 = arith.constant dense<0.000000e+00> : vector<1x64xf32>
    %11 = tpu.matmul %10, %7, %cst_11 {dimension_numbers = #tpu.dot_dimension_numbers<[1], [0], [0], [1], [0, 0, 1, 1], [], []>} : vector<1x4xf32>, vector<4x64xf32>, vector<1x64xf32> -> vector<1x64xf32>
    %12 = arith.negf %11 : vector<1x64xf32>
    %13 = math.exp %12 : vector<1x64xf32>
    %cst_12 = arith.constant 1.000000e+00 : f32
    %14 = vector.broadcast %cst_12 : f32 to vector<1x64xf32>
    %15 = arith.addf %14, %13 : vector<1x64xf32>
    %16 = arith.divf %14, %15 : vector<1x64xf32>
    %c0_13 = arith.constant 0 : index
    %c0_14 = arith.constant 0 : index
    %c0_15 = arith.constant 0 : index
    %17 = vector.load %arg1[%c0_13, %c0_14, %c0_15] : memref<1x64x256xf32, #tpu.memory_space<vmem>>, vector<1x64x256xf32>
    %18 = vector.shape_cast %16 : vector<1x64xf32> to vector<1x64x1xf32>
    %19 = vector.broadcast %18 : vector<1x64x1xf32> to vector<1x64x256xf32>
    %20 = arith.mulf %17, %19 : vector<1x64x256xf32>
    %c0_16 = arith.constant 0 : index
    %c0_17 = arith.constant 0 : index
    %c0_18 = arith.constant 0 : index
    %21 = vector.load %arg4[%c0_16, %c0_17, %c0_18] : memref<1x64x256xf32, #tpu.memory_space<vmem>>, vector<1x64x256xf32>
    tpu.vector_store %arg4[%c0_16, %c0_17, %c0_18], %20 {strides = array<i32>} : memref<1x64x256xf32, #tpu.memory_space<vmem>>, vector<1x64x256xf32>,
    return
  }
  func.func @transform_0(%arg0: i32) -> (i32, i32, i32) {
    %c0_i32 = arith.constant 0 : i32
    %c0_i32_0 = arith.constant 0 : i32
    %c0_i32_1 = arith.constant 0 : i32
    return %arg0, %c0_i32, %c0_i32_0 : i32, i32, i32
  }
  func.func @transform_1(%arg0: i32) -> (i32, i32) {
    %c0_i32 = arith.constant 0 : i32
    %c0_i32_0 = arith.constant 0 : i32
    %c0_i32_1 = arith.constant 0 : i32
    return %c0_i32, %c0_i32_0 : i32, i32
  }
  func.func @transform_2(%arg0: i32) -> (i32, i32) {
    %c0_i32 = arith.constant 0 : i32
    %c0_i32_0 = arith.constant 0 : i32
    %c0_i32_1 = arith.constant 0 : i32
    return %c0_i32, %c0_i32_0 : i32, i32
  }
  func.func @transform_3(%arg0: i32) -> (i32, i32, i32) {
    %c0_i32 = arith.constant 0 : i32
    %c0_i32_0 = arith.constant 0 : i32
    %c0_i32_1 = arith.constant 0 : i32
    return %arg0, %c0_i32, %c0_i32_0 : i32, i32, i32
  }
}

</mosaic_0001>

<llo_original>
// kernel: tpu_custom_call.1
$region0: #{tpu_custom_call.1}
  #allocation0 [shape = 'u32[]', space=smem, size = 0x4, offset = 0x4, fixed_abs, tag = 'smem constant byte address 0x4 - core index']
  #allocation1 [shape = 'u32[72,128]{1,0:T(1,128)}', space=vmem, size = 0x9000, scoped, tag = 'internal scratch']
  %s0 = inlined_call_operand.hbm [shape: f32[2,64,256], index: 0, kind: input, shape index: {}]
  %s1 = inlined_call_operand.vmem [shape: f32[64,4], index: 1, kind: input, shape index: {}]
  %s2 = inlined_call_operand.vmem [shape: f32[4,64], index: 2, kind: input, shape index: {}]
  %s3 = inlined_call_operand.hbm [shape: f32[2,64,256], index: 3, kind: output, shape index: {}]
  %s4 = sld [smem:[#allocation0]]
  $region49: #{tpu_custom_call.1} parent=0
    _
  %s6 = ssub.s32 1, %s4
  %s7 = scalar_select 0, %s6, %s4
  $region1: #{tpu_custom_call.1} parent=0
    #allocation2 [shape = 'u8[131072]{0}', space=vmem, size = 0x20000, scoped, tag = 'input window, operand 0']
    #allocation3 [shape = 's32[2]{0}', space=sflag, size = 0x8, scoped, tag = 'scoped memory for tpu_custom_call.1']
    #allocation4 [shape = 's32[2]{0}', space=sflag, size = 0x8, scoped, tag = 'scoped memory for tpu_custom_call.1']
    #allocation5 [shape = 'u8[131072]{0}', space=vmem, size = 0x20000, scoped, tag = 'output window, operand 0']
    %8 = vsyncpa [#allocation3], 0
    %s9 = scalar_lea.sflag [#allocation3], 1
    %10 = vsyncpa %s9, 0
    %11 = vsyncpa [#allocation4], 0
    %s12 = scalar_lea.sflag [#allocation4], 1
    %13 = vsyncpa %s12, 0
    loop: start=0, step=1, limit=4
    $region2: #{tpu_custom_call.1} parent=1 // loop_pre_header
      _
    $region3: #{tpu_custom_call.1} parent=1 // loop_header
      %s15 = sphi 0, %s19
      %p16 = scmp.ge.s32.totalorder %s15, 4
      %s25 = sphi 0, %s27
      %s28 = sphi 0, %s25
      %s29 = sphi 0, %s28
      %s45 = sphi 0, %s29
      %s49 = sphi 0, %s49
      %s51 = sphi 0, %s49
      %s52 = sphi 0, %s51
      %s66 = sphi 0, %s52
      %s70 = sphi 0, %s70
      %s72 = sphi 0, %s70
      %s73 = sphi 0, %s72
      %s87 = sphi 0, %s73
      %s93 = sphi 0, %s95
      %s96 = sphi 0, %s93
      %s97 = sphi 0, %s96
      %s113 = sphi 0, %s97
    $region4: #{tpu_custom_call.1} parent=1 // loop_header_branch
      %18 = sbr.rel (%p16) target = $region8
    $region5: #{tpu_custom_call.1} parent=1 // loop_body
      %s20 = ssub.s32 %s15, 1
      %s21 = ssub.s32 %s15, 2
      %s22 = sadd.s32 %s15, 1
      %s23 = ssub.s32 %s15, %s22
      %p24 = scmp.eq.s32.totalorder %s23, 0
      %s26 = sadd.s32 %s25, 1
      %s27 = scalar_select %p24, %s25, %s26
      %p30 = pneg %p24
      %p31 = scmp.eq.s32.totalorder %s15, 1
      %p32 = por %p30, %p31
      %p33 = scmp.ne.s32.totalorder %s25, %s28
      %p34 = scmp.eq.s32.totalorder %s15, 0
      %p35 = por %p33, %p34
      %p36 = scmp.ne.s32.totalorder %s25, %s28
      %p37 = scmp.eq.s32.totalorder %s20, 1
      %p38 = por %p36, %p37
      %p39 = scmp.ne.s32.totalorder %s28, %s29
      %p40 = scmp.eq.s32.totalorder %s20, 0
      %p41 = por %p39, %p40
      %p42 = scmp.ne.s32.totalorder %s28, %s29
      %p43 = scmp.eq.s32.totalorder %s21, 1
      %p44 = por %p42, %p43
      %p46 = scmp.ne.s32.totalorder %s29, %s45
      %p47 = scmp.eq.s32.totalorder %s21, 0
      %p48 = por %p46, %p47
      %s50 = sadd.s32 %s49, 1
      %p53 = scmp.eq.s32.totalorder %s15, 1
      %p54 = scmp.ne.s32.totalorder %s49, %s51
      %p55 = scmp.eq.s32.totalorder %s15, 0
      %p56 = por %p54, %p55
      %p57 = scmp.ne.s32.totalorder %s49, %s51
      %p58 = scmp.eq.s32.totalorder %s20, 1
      %p59 = por %p57, %p58
      %p60 = scmp.ne.s32.totalorder %s51, %s52
      %p61 = scmp.eq.s32.totalorder %s20, 0
      %p62 = por %p60, %p61
      %p63 = scmp.ne.s32.totalorder %s51, %s52
      %p64 = scmp.eq.s32.totalorder %s21, 1
      %p65 = por %p63, %p64
      %p67 = scmp.ne.s32.totalorder %s52, %s66
      %p68 = scmp.eq.s32.totalorder %s21, 0
      %p69 = por %p67, %p68
      %s71 = sadd.s32 %s70, 1
      %p74 = scmp.eq.s32.totalorder %s15, 1
      %p75 = scmp.ne.s32.totalorder %s70, %s72
      %p76 = scmp.eq.s32.totalorder %s15, 0
      %p77 = por %p75, %p76
      %p78 = scmp.ne.s32.totalorder %s70, %s72
      %p79 = scmp.eq.s32.totalorder %s20, 1
      %p80 = por %p78, %p79
      %p81 = scmp.ne.s32.totalorder %s72, %s73
      %p82 = scmp.eq.s32.totalorder %s20, 0
      %p83 = por %p81, %p82
      %p84 = scmp.ne.s32.totalorder %s72, %s73
      %p85 = scmp.eq.s32.totalorder %s21, 1
      %p86 = por %p84, %p85
      %p88 = scmp.ne.s32.totalorder %s73, %s87
      %p89 = scmp.eq.s32.totalorder %s21, 0
      %p90 = por %p88, %p89
      %s91 = ssub.s32 %s15, %s22
      %p92 = scmp.eq.s32.totalorder %s91, 0
      %s94 = sadd.s32 %s93, 1
      %s95 = scalar_select %p92, %s93, %s94
      %p98 = pneg %p92
      %p99 = scmp.eq.s32.totalorder %s15, 1
      %p100 = por %p98, %p99
      %p101 = scmp.ne.s32.totalorder %s93, %s96
      %p102 = scmp.eq.s32.totalorder %s15, 0
      %p103 = por %p101, %p102
      %p104 = scmp.ne.s32.totalorder %s93, %s96
      %p105 = scmp.eq.s32.totalorder %s20, 1
      %p106 = por %p104, %p105
      %p107 = scmp.ne.s32.totalorder %s96, %s97
      %p108 = scmp.eq.s32.totalorder %s20, 0
      %p109 = por %p107, %p108
      %p110 = scmp.ne.s32.totalorder %s96, %s97
      %p111 = scmp.eq.s32.totalorder %s21, 1
      %p112 = por %p110, %p111
      %p114 = scmp.ne.s32.totalorder %s97, %s113
      %p115 = scmp.eq.s32.totalorder %s21, 0
      %p116 = por %p114, %p115
      %p117 = scmp.le.s32.totalorder 1, %s15
      %p118 = scmp.lt.s32.totalorder %s15, 3
      %p119 = pnand %p117, %p118
      %p120 = pneg %p119
      // Predicated region
      $region9: #{tpu_custom_call.1} parent=5 // pred_check
        _
      $region10: #{tpu_custom_call.1} parent=5 // pred_check_branch
        %122 = sbr.rel (%p119) target = $region12
      $region11: #{tpu_custom_call.1} parent=5 // pred_region
        %s123 = ssub.s32 %s15, 1
        // Predicated region
        $region13: #{tpu_custom_call.1} parent=11 // pred_check
          %p124 = pneg %p62
        $region14: #{tpu_custom_call.1} parent=11 // pred_check_branch
          %126 = sbr.rel (%p124) target = $region16
        $region15: #{tpu_custom_call.1} parent=11 // pred_region
          _
        $region16: #{tpu_custom_call.1} parent=11 // pred_fallthru
          _
        // Predicated region
        $region17: #{tpu_custom_call.1} parent=11 // pred_check
          %p127 = pneg %p83
        $region18: #{tpu_custom_call.1} parent=11 // pred_check_branch
          %129 = sbr.rel (%p127) target = $region20
        $region19: #{tpu_custom_call.1} parent=11 // pred_region
          _
        $region20: #{tpu_custom_call.1} parent=11 // pred_fallthru
          _
      $region12: #{tpu_custom_call.1} parent=5 // pred_fallthru
        _
      %p130 = scmp.lt.s32.totalorder %s15, 2
      // Predicated region
      $region21: #{tpu_custom_call.1} parent=5 // pred_check
        %p131 = pneg %p130
      $region22: #{tpu_custom_call.1} parent=5 // pred_check_branch
        %133 = sbr.rel (%p131) target = $region24
      $region23: #{tpu_custom_call.1} parent=5 // pred_region
        // Predicated region
        $region25: #{tpu_custom_call.1} parent=23 // pred_check
          %p134 = pneg %p35
        $region26: #{tpu_custom_call.1} parent=23 // pred_check_branch
          %136 = sbr.rel (%p134) target = $region28
        $region27: #{tpu_custom_call.1} parent=23 // pred_region
          %s137 = sand.u32 %s25, 1
          %s138 = scalar_lea.sflag [#allocation3], %s137
          %s139 = sand.u32 %s25, 1
          %s140 = smul.addr %s139, 128
          %s141 = scalar_lea.vmem [#allocation2], %s140
          %143 = vsyncadd %s138, 0
          %s144 = smul.addr %s15, 16
          %s145 = smul.addr %s144, 8
          %s146 = scalar_lea.hbm %s0, %s145
          %s147 = sshll.u32 %s146, 4
          %s148 = int_to_ptr.hbm [resolvable:$true] %s147
          %s149 = sshll.u32 %s141, 4
          %s150 = int_to_ptr.vmem [resolvable:$true] %s149
          %155 = dma.hbm_to_vmem [thread:$0]  %s148, 2048, %s150, %s138, 256, 256, 16
        $region28: #{tpu_custom_call.1} parent=23 // pred_fallthru
          _
      $region24: #{tpu_custom_call.1} parent=5 // pred_fallthru
        _
      %p156 = scmp.le.s32.totalorder 1, %s15
      %p157 = scmp.lt.s32.totalorder %s15, 3
      %p158 = pnand %p156, %p157
      %p159 = pneg %p158
      // Predicated region
      $region29: #{tpu_custom_call.1} parent=5 // pred_check
        _
      $region30: #{tpu_custom_call.1} parent=5 // pred_check_branch
        %161 = sbr.rel (%p158) target = $region32
      $region31: #{tpu_custom_call.1} parent=5 // pred_region
        %s162 = ssub.s32 %s15, 1
        %s163 = sand.u32 %s28, 1
        %s164 = scalar_lea.sflag [#allocation3], %s163
        %s165 = sand.u32 %s28, 1
        %s166 = smul.addr %s165, 128
        %s167 = scalar_lea.vmem [#allocation2], %s166
        // Predicated region
        $region33: #{tpu_custom_call.1} parent=31 // pred_check
          %p168 = pneg %p41
        $region34: #{tpu_custom_call.1} parent=31 // pred_check_branch
          %170 = sbr.rel (%p168) target = $region36
        $region35: #{tpu_custom_call.1} parent=31 // pred_region
          %172 = dma.done %s164, 2048
        $region36: #{tpu_custom_call.1} parent=31 // pred_fallthru
          _
        %s173 = sand.u32 %s28, 1
        %s174 = scalar_lea.sflag [#allocation3], %s173
        %s175 = sand.u32 %s28, 1
        %s176 = smul.addr %s175, 128
        %s177 = scalar_lea.vmem [#allocation2], %s176
        %p178 = pneg %p41
        %p179 = pneg %p38
        %p180 = pneg %p62
        %p181 = pneg %p59
        %p182 = pneg %p83
        %p183 = pneg %p80
        %p184 = pneg %p109
        %p185 = pneg %p106
        %s186 = sand.u32 %s96, 1
        %s187 = scalar_lea.sflag [#allocation4], %s186
        %s188 = sand.u32 %s96, 1
        %s189 = smul.addr %s188, 128
        %s190 = scalar_lea.vmem [#allocation5], %s189
        %v191 = vld [vmem:[%s167] sm:$0xff]
        %v192 = vld [vmem:[%s167 + $0x10] sm:$0xff]
        %v193 = vld [vmem:[%s167 + $0x20] sm:$0xff]
        %v194 = vld [vmem:[%s167 + $0x30] sm:$0xff]
        %v195 = vld [vmem:[%s167 + $0x40] sm:$0xff]
        %v196 = vld [vmem:[%s167 + $0x50] sm:$0xff]
        %v197 = vld [vmem:[%s167 + $0x60] sm:$0xff]
        %v198 = vld [vmem:[%s167 + $0x70] sm:$0xff]
        %v199 = vld [vmem:[%s167 + $0x8] sm:$0xff]
        %v200 = vld [vmem:[%s167 + $0x18] sm:$0xff]
        %v201 = vld [vmem:[%s167 + $0x28] sm:$0xff]
        %v202 = vld [vmem:[%s167 + $0x38] sm:$0xff]
        %v203 = vld [vmem:[%s167 + $0x48] sm:$0xff]
        %v204 = vld [vmem:[%s167 + $0x58] sm:$0xff]
        %v205 = vld [vmem:[%s167 + $0x68] sm:$0xff]
        %v206 = vld [vmem:[%s167 + $0x78] sm:$0xff]
        %v207 = vadd.f32 %v191, %v199
        %v208 = vadd.f32 %v192, %v200
        %v209 = vadd.f32 %v193, %v201
        %v210 = vadd.f32 %v194, %v202
        %v211 = vadd.f32 %v195, %v203
        %v212 = vadd.f32 %v196, %v204
        %v213 = vadd.f32 %v197, %v205
        %v214 = vadd.f32 %v198, %v206
        %215 = vadd.xlane.f32.xlu0 %v207
        %v216 = vpop.xlane.xlu0 %215
        %217 = vadd.xlane.f32.xlu0 %v208
        %v218 = vpop.xlane.xlu0 %217
        %219 = vadd.xlane.f32.xlu0 %v209
        %v220 = vpop.xlane.xlu0 %219
        %221 = vadd.xlane.f32.xlu0 %v210
        %v222 = vpop.xlane.xlu0 %221
        %223 = vadd.xlane.f32.xlu0 %v211
        %v224 = vpop.xlane.xlu0 %223
        %225 = vadd.xlane.f32.xlu0 %v212
        %v226 = vpop.xlane.xlu0 %225
        %227 = vadd.xlane.f32.xlu0 %v213
        %v228 = vpop.xlane.xlu0 %227
        %229 = vadd.xlane.f32.xlu0 %v214
        %v230 = vpop.xlane.xlu0 %229
        %v231 = vmul.f32 %v216, 0.00390625
        %v232 = vmul.f32 %v218, 0.00390625
        %v233 = vmul.f32 %v220, 0.00390625
        %v234 = vmul.f32 %v222, 0.00390625
        %v235 = vmul.f32 %v224, 0.00390625
        %v236 = vmul.f32 %v226, 0.00390625
        %v237 = vmul.f32 %v228, 0.00390625
        %v238 = vmul.f32 %v230, 0.00390625
        %v239 = vld [vmem:[%s1] sm:$0xff]
        %v240 = vld [vmem:[%s1 + $0x8] sm:$0xff]
        %v241 = vld [vmem:[%s1 + $0x10] sm:$0xff]
        %v242 = vld [vmem:[%s1 + $0x18] sm:$0xff]
        %v243 = vld [vmem:[%s1 + $0x20] sm:$0xff]
        %v244 = vld [vmem:[%s1 + $0x28] sm:$0xff]
        %v245 = vld [vmem:[%s1 + $0x30] sm:$0xff]
        %v246 = vld [vmem:[%s1 + $0x38] sm:$0xff]
        %v247 = vld [vmem:[%s2] sm:$0xf]
        %v256 = vlaneseq
        %v257 = vand.u32 %v256, 127
        %v258 = vperm.slane %v231, %v257
        %v259 = vadd.s32 %v257, 4294967288
        %v260 = vperm.slane %v232, %v259
        %vm261 = vcmask 130112
        %v262 = vsel %vm261, %v260, %v258
        %v263 = vadd.s32 %v257, 4294967280
        %v264 = vperm.slane %v233, %v263
        %vm265 = vcmask 195712
        %v266 = vsel %vm265, %v264, %v262
        %v267 = vadd.s32 %v257, 4294967272
        %v268 = vperm.slane %v234, %v267
        %vm269 = vcmask 261312
        %v270 = vsel %vm269, %v268, %v266
        %v271 = vadd.s32 %v257, 4294967264
        %v272 = vperm.slane %v235, %v271
        %vm273 = vcmask 326912
        %v274 = vsel %vm273, %v272, %v270
        %v275 = vadd.s32 %v257, 4294967256
        %v276 = vperm.slane %v236, %v275
        %vm277 = vcmask 392512
        %v278 = vsel %vm277, %v276, %v274
        %v279 = vadd.s32 %v257, 4294967248
        %v280 = vperm.slane %v237, %v279
        %vm281 = vcmask 458112
        %v282 = vsel %vm281, %v280, %v278
        %v283 = vadd.s32 %v257, 4294967240
        %v284 = vperm.slane %v238, %v283
        %vm285 = vcmask 523712
        %v286 = vsel %vm285, %v284, %v282
        %vm287 = vcmask 523264
        %v288 = vsel %vm287, %v286, 0
        %290 = vmatpush.msra.mxu0 0.0
        %291 = vmatpush.msra.mxu0 0.0
        %292 = vmatpush.msra.mxu0 0.0
        %293 = vmatpush.msra.mxu0 0.0
        %294 = vmatpush.msra.mxu0 0.0
        %295 = vmatpush.msra.mxu0 0.0
        %296 = vmatpush.msra.mxu0 0.0
        %297 = vmatpush.msra.mxu0 0.0
        %298 = vmatpush.msra.mxu0 %v246
        %299 = vmatpush.msra.mxu0 %v245
        %300 = vmatpush.msra.mxu0 %v244
        %301 = vmatpush.msra.mxu0 %v243
        %302 = vmatpush.msra.mxu0 %v242
        %303 = vmatpush.msra.mxu0 %v241
        %304 = vmatpush.msra.mxu0 %v240
        %305 = vmatpush.msra.mxu0 %v239
        %306 = vmatmul.f32.gmra.mxu0 %v288
        %v307 = vpop.f32.mrf.mxu0
        %v308 = vadd.f32 0.0, %v307
        %309 = vdwg.mxu0
        %v310 = vmax.f32 %v308, 0.0
        %vm311 = vcmask 31744
        %v313 = vsel %vm311, %v310, 0
        %vm315 = vcmask 1043456
        %v317 = vsel %vm315, %v247, 0
        %319 = vmatpush.msra.mxu0 0.0
        %320 = vmatpush.msra.mxu0 0.0
        %321 = vmatpush.msra.mxu0 0.0
        %322 = vmatpush.msra.mxu0 0.0
        %323 = vmatpush.msra.mxu0 0.0
        %324 = vmatpush.msra.mxu0 0.0
        %325 = vmatpush.msra.mxu0 0.0
        %326 = vmatpush.msra.mxu0 0.0
        %327 = vmatpush.msra.mxu0 0.0
        %328 = vmatpush.msra.mxu0 0.0
        %329 = vmatpush.msra.mxu0 0.0
        %330 = vmatpush.msra.mxu0 0.0
        %331 = vmatpush.msra.mxu0 0.0
        %332 = vmatpush.msra.mxu0 0.0
        %333 = vmatpush.msra.mxu0 0.0
        %334 = vmatpush.msra.mxu0 %v317
        %335 = vmatmul.f32.gmra.mxu0 %v313
        %v336 = vpop.f32.mrf.mxu0
        %v337 = vadd.f32 0.0, %v336
        %338 = vdwg.mxu0
        %v339 = vxor.u32 %v337, 2147483648
        %v340 = vmul.f32 %v339, 1.442695
        %v341 = vpow.pop %v340
        %v342 = vadd.f32 %v341, 1.0
        %v343 = vrcp.pop %v342
        %v344 = vmul.f32 %v342, %v343
        %v345 = vsub.f32 1.0, %v344
        %v346 = vmul.f32 %v343, %v345
        %v347 = vadd.f32 %v343, %v346
        %vm348 = vweird.f32 %v342
        %vm349 = vweird.f32 %v343
        %vm350 = vmor %vm348, %vm349
        %v351 = vsel %vm350, %v343, %v347
        %v352 = vand.u32 2147483647, %v342
        %vm353 = vcmp.eq.f32.partialorder %v352, 8.507059e+37
        %v354 = vand.u32 %v342, 2147483648
        %v355 = vor.u32 1.1754944e-38, %v354
        %v356 = vsel %vm353, %v355, %v351
        %v357 = vmul.f32 1.0, %v356
        %v358 = vld [vmem:[%s167] sm:$0xff]
        %v359 = vld [vmem:[%s167 + $0x10] sm:$0xff]
        %v360 = vld [vmem:[%s167 + $0x20] sm:$0xff]
        %v361 = vld [vmem:[%s167 + $0x30] sm:$0xff]
        %v362 = vld [vmem:[%s167 + $0x40] sm:$0xff]
        %v363 = vld [vmem:[%s167 + $0x50] sm:$0xff]
        %v364 = vld [vmem:[%s167 + $0x60] sm:$0xff]
        %v365 = vld [vmem:[%s167 + $0x70] sm:$0xff]
        %v366 = vperm.slane %v357, 0
        %v367 = vlaneseq
        %v368 = vshrl.u32 %v367, 7
        %370 = vset.pattern.permute.xlu0 %v368
        %371 = vperm.xlu0 %370, %v366
        %v372 = vpop.permute.xlu0 %371
        %v373 = vlaneseq
        %v374 = vshrl.u32 %v373, 7
        %v375 = vadd.s32 %v374, 8
        %376 = vset.pattern.permute.xlu0 %v375
        %377 = vperm.xlu0 %376, %v366
        %v378 = vpop.permute.xlu0 %377
        %v379 = vlaneseq
        %v380 = vshrl.u32 %v379, 7
        %v381 = vadd.s32 %v380, 16
        %382 = vset.pattern.permute.xlu0 %v381
        %383 = vperm.xlu0 %382, %v366
        %v384 = vpop.permute.xlu0 %383
        %v385 = vlaneseq
        %v386 = vshrl.u32 %v385, 7
        %v387 = vadd.s32 %v386, 24
        %388 = vset.pattern.permute.xlu0 %v387
        %389 = vperm.xlu0 %388, %v366
        %v390 = vpop.permute.xlu0 %389
        %v391 = vlaneseq
        %v392 = vshrl.u32 %v391, 7
        %v393 = vadd.s32 %v392, 32
        %394 = vset.pattern.permute.xlu0 %v393
        %395 = vperm.xlu0 %394, %v366
        %v396 = vpop.permute.xlu0 %395
        %v397 = vlaneseq
        %v398 = vshrl.u32 %v397, 7
        %v399 = vadd.s32 %v398, 40
        %400 = vset.pattern.permute.xlu0 %v399
        %401 = vperm.xlu0 %400, %v366
        %v402 = vpop.permute.xlu0 %401
        %v403 = vlaneseq
        %v404 = vshrl.u32 %v403, 7
        %v405 = vadd.s32 %v404, 48
        %406 = vset.pattern.permute.xlu0 %v405
        %407 = vperm.xlu0 %406, %v366
        %v408 = vpop.permute.xlu0 %407
        %v409 = vlaneseq
        %v410 = vshrl.u32 %v409, 7
        %v411 = vadd.s32 %v410, 56
        %412 = vset.pattern.permute.xlu0 %v411
        %413 = vperm.xlu0 %412, %v366
        %v414 = vpop.permute.xlu0 %413
        %v415 = vmul.f32 %v358, %v372
        %v416 = vmul.f32 %v199, %v372
        %v417 = vmul.f32 %v359, %v378
        %v418 = vmul.f32 %v200, %v378
        %v419 = vmul.f32 %v360, %v384
        %v420 = vmul.f32 %v201, %v384
        %v421 = vmul.f32 %v361, %v390
        %v422 = vmul.f32 %v202, %v390
        %v423 = vmul.f32 %v362, %v396
        %v424 = vmul.f32 %v203, %v396
        %v425 = vmul.f32 %v363, %v402
        %v426 = vmul.f32 %v204, %v402
        %v427 = vmul.f32 %v364, %v408
        %v428 = vmul.f32 %v205, %v408
        %v429 = vmul.f32 %v365, %v414
        %v430 = vmul.f32 %v206, %v414
        %431 = vst [vmem:[%s190] sm:$0xff] %v415
        %432 = vst [vmem:[%s190 + $0x8] sm:$0xff] %v416
        %433 = vst [vmem:[%s190 + $0x10] sm:$0xff] %v417
        %434 = vst [vmem:[%s190 + $0x18] sm:$0xff] %v418
        %435 = vst [vmem:[%s190 + $0x20] sm:$0xff] %v419
        %436 = vst [vmem:[%s190 + $0x28] sm:$0xff] %v420
        %437 = vst [vmem:[%s190 + $0x30] sm:$0xff] %v421
        %438 = vst [vmem:[%s190 + $0x38] sm:$0xff] %v422
        %439 = vst [vmem:[%s190 + $0x40] sm:$0xff] %v423
        %440 = vst [vmem:[%s190 + $0x48] sm:$0xff] %v424
        %441 = vst [vmem:[%s190 + $0x50] sm:$0xff] %v425
        %442 = vst [vmem:[%s190 + $0x58] sm:$0xff] %v426
        %443 = vst [vmem:[%s190 + $0x60] sm:$0xff] %v427
        %444 = vst [vmem:[%s190 + $0x68] sm:$0xff] %v428
        %445 = vst [vmem:[%s190 + $0x70] sm:$0xff] %v429
        %446 = vst [vmem:[%s190 + $0x78] sm:$0xff] %v430
        %s447 = sand.u32 %s96, 1
        %s448 = scalar_lea.sflag [#allocation4], %s447
        %s449 = sand.u32 %s96, 1
        %s450 = smul.addr %s449, 128
        %s451 = scalar_lea.vmem [#allocation5], %s450
        // Predicated region
        $region37: #{tpu_custom_call.1} parent=31 // pred_check
          %p452 = pneg %p106
        $region38: #{tpu_custom_call.1} parent=31 // pred_check_branch
          %454 = sbr.rel (%p452) target = $region40
        $region39: #{tpu_custom_call.1} parent=31 // pred_region
          %456 = vsyncadd %s448, 0
          %s457 = smul.addr %s20, 16
          %s458 = smul.addr %s457, 8
          %s459 = scalar_lea.hbm %s3, %s458
          %s460 = sshll.u32 %s451, 4
          %s461 = int_to_ptr.vmem [resolvable:$true] %s460
          %s462 = sshll.u32 %s459, 4
          %s463 = int_to_ptr.hbm [resolvable:$true] %s462
          %468 = dma.vmem_to_hbm [thread:$0]  %s461, 2048, %s463, %s448, 256, 256, 16
        $region40: #{tpu_custom_call.1} parent=31 // pred_fallthru
          _
      $region32: #{tpu_custom_call.1} parent=5 // pred_fallthru
        _
      %p469 = scmp.le.s32.totalorder 2, %s15
      // Predicated region
      $region41: #{tpu_custom_call.1} parent=5 // pred_check
        %p470 = pneg %p469
      $region42: #{tpu_custom_call.1} parent=5 // pred_check_branch
        %472 = sbr.rel (%p470) target = $region44
      $region43: #{tpu_custom_call.1} parent=5 // pred_region
        %s473 = ssub.s32 %s15, 2
        // Predicated region
        $region45: #{tpu_custom_call.1} parent=43 // pred_check
          %p474 = pneg %p112
        $region46: #{tpu_custom_call.1} parent=43 // pred_check_branch
          %476 = sbr.rel (%p474) target = $region48
        $region47: #{tpu_custom_call.1} parent=43 // pred_region
          %s477 = sand.u32 %s97, 1
          %s478 = scalar_lea.sflag [#allocation4], %s477
          %s479 = sand.u32 %s97, 1
          %s480 = smul.addr %s479, 128
          %s481 = scalar_lea.vmem [#allocation5], %s480
          %483 = dma.done %s478, 2048
        $region48: #{tpu_custom_call.1} parent=43 // pred_fallthru
          _
      $region44: #{tpu_custom_call.1} parent=5 // pred_fallthru
        _
    $region6: #{tpu_custom_call.1} parent=1 // loop_footer
      %s19 = sadd.s32 1, %s15
    $region7: #{tpu_custom_call.1} parent=1 // loop_footer_branch
      %14 = sbr.rel target = $region3
    $region8: #{tpu_custom_call.1} parent=1 // loop_exit
      _
    %484 = vsyncpa [#allocation3], 1
    %s485 = scalar_lea.sflag [#allocation3], 1
    %486 = vsyncpa %s485, 1
    %487 = vsyncpa [#allocation4], 1
    %s488 = scalar_lea.sflag [#allocation4], 1
    %489 = vsyncpa %s488, 1

</llo_original>
